<compile_context>
chip_gen: v7x
topology: tpu7x:2x2x1
jax: 0.10.0
libtpu: 0.0.40
codegen_flags: <defaults>
</compile_context>

<pallas_src>
import jax
import jax.numpy as jnp
from jax.experimental import pallas as pl
from jax.experimental.pallas import tpu as pltpu

LANE = 128  # lane width / width-tile size


def _make_flip_kernel(dtype):
    """Kernel closure; precision/compute dtype chosen statically from dtype."""
    if dtype == jnp.bfloat16:
        cdtype, prec = jnp.bfloat16, jax.lax.Precision.DEFAULT   # 1-pass, exact for 0/1 perm
    else:
        # f32 is exact through HIGHEST (6-pass); integers exact up to 2^24.
        cdtype, prec = jnp.float32, jax.lax.Precision.HIGHEST

    def kernel(flip_ref, x_ref, o_ref):
        @pl.when(flip_ref[0] == 0)
        def _copy():
            o_ref[...] = x_ref[...]

        @pl.when(flip_ref[0] != 0)
        def _flip():
            # 128x128 anti-identity built from iota (VPU filler, ~free here).
            r = jax.lax.broadcasted_iota(jnp.int32, (LANE, LANE), 0)
            c = jax.lax.broadcasted_iota(jnp.int32, (LANE, LANE), 1)
            rev = jnp.where(r + c == LANE - 1, 1.0, 0.0).astype(cdtype)
            x = x_ref[...].astype(cdtype)
            y = jnp.dot(x, rev, preferred_element_type=jnp.float32, precision=prec)
            o_ref[...] = y.astype(o_ref.dtype)

    return kernel


def _pick_rows_per_block(rows: int, itemsize: int) -> int:
    """Row-tile size: sublane-aligned, a few MiB of VMEM, even grid, >=8 steps."""
    align = {4: 8, 2: 16, 1: 32}.get(itemsize, 8)
    # double-buffered in+out blocks plus f32 compute temporaries, per row
    per_row = LANE * (itemsize * 4 + 4 * 4)
    budget = 6 << 20                       # well under every generation's VMEM
    max_tr = max(align, (budget // per_row) // align * align)

    cands = [d for d in range(align, min(rows, max_tr) + 1, align) if rows % d == 0]
    if not cands:
        # No aligned divisor: full-rows block if it fits, else aligned block
        # with a masked partial trailing block (grid uses cdiv).
        return rows if rows <= max_tr else max_tr

    def steps(d):
        return -(-rows // d)

    for pred in (lambda d: steps(d) >= 8 and steps(d) % 2 == 0,   # pipelined + both TCs
                 lambda d: steps(d) % 2 == 0,                     # at least both TCs
                 lambda d: True):
        good = [d for d in cands if pred(d)]
        if good:
            return max(good)


def _hflip_2d(x2d: jnp.ndarray, flip_flag: jnp.ndarray) -> jnp.ndarray:
    """Reverse the last axis of [rows, W] iff flip_flag[0] != 0."""
    rows, w = x2d.shape
    if w % LANE != 0:
        # TODO(synk): non-lane-dense widths take the XLA path (masked stores
        # would dominate a Pallas version at these shapes).
        return jnp.where(flip_flag[0] != 0, x2d[:, ::-1], x2d)

    nwb = w // LANE
    tr = _pick_rows_per_block(rows, x2d.dtype.itemsize)
    grid = (pl.cdiv(rows, tr), nwb)

    def x_map(i, j, flip_ref):
        f = flip_ref[0]                      # 0 or 1, read from SMEM
        return (i, j + f * (nwb - 1 - 2 * j))  # j when not flipping, nwb-1-j when flipping

    def o_map(i, j, flip_ref):
        return (i, j)

    return pl.pallas_call(
        _make_flip_kernel(x2d.dtype),
        out_shape=jax.ShapeDtypeStruct((rows, w), x2d.dtype),
        grid_spec=pltpu.PrefetchScalarGridSpec(
            num_scalar_prefetch=1,
            grid=grid,
            in_specs=[pl.BlockSpec((tr, LANE), x_map)],
            out_specs=pl.BlockSpec((tr, LANE), o_map),
        ),
        compiler_params=pltpu.CompilerParams(
            dimension_semantics=("parallel", "parallel"),
        ),
    )(flip_flag, x2d)


def hflip_pair(img: jnp.ndarray, seg_map: jnp.ndarray, do_flip):
    """Horizontally flip both tensors iff `do_flip` (traced/concrete bool)."""
    flip_flag = jnp.asarray(do_flip).astype(jnp.int32).reshape(1)
    out_img = _hflip_2d(img.reshape(-1, img.shape[-1]), flip_flag).reshape(img.shape)
    out_map = _hflip_2d(seg_map.reshape(-1, seg_map.shape[-1]), flip_flag).reshape(seg_map.shape)
    return out_img, out_map


class RandomHorizontalFlip:
    """JAX/Pallas equivalent of the PyTorch RandomHorizontalFlip transform."""

    def __init__(self, p: float = 0.5):
        self.p = p

    def __call__(self, img, seg_map, key):
        # torch.rand(1) < p  ->  uniform[0,1) < p  (explicit JAX PRNG key)
        do_flip = jax.random.uniform(key, (), jnp.float32) < jnp.float32(self.p)
        return hflip_pair(img, seg_map, do_flip)

    def __repr__(self) -> str:
        return f"{self.__class__.__name__}(p={self.p})"


if __name__ == "__main__":
    key = jax.random.PRNGKey(0)
    k_img, k_map, k_coin = jax.random.split(key, 3)

    # img: [N=2, C=3, H=8, W=256] float32, seg map: [N=2, C=1, H=8, W=256] int32 labels
    img = jax.random.normal(k_img, (2, 3, 8, 256), dtype=jnp.float32)
    seg = jax.random.randint(k_map, (2, 1, 8, 256), 0, 21, dtype=jnp.int32)

    ref_img = img[..., ::-1]
    ref_seg = seg[..., ::-1]

    # p = 1.0 -> always flip; p = 0.0 -> never flip (exercise both kernel branches)
    out_img_f, out_seg_f = RandomHorizontalFlip(p=1.0)(img, seg, k_coin)
    out_img_n, out_seg_n = RandomHorizontalFlip(p=0.0)(img, seg, k_coin)
    for a in (out_img_f, out_seg_f, out_img_n, out_seg_n):
        jax.block_until_ready(a)

    assert out_img_f.shape == img.shape and out_seg_f.shape == seg.shape
    assert jnp.allclose(out_img_f, ref_img, atol=1e-6, rtol=1e-6)
    assert jnp.array_equal(out_seg_f, ref_seg)
    assert jnp.allclose(out_img_n, img, atol=1e-6, rtol=1e-6)
    assert jnp.array_equal(out_seg_n, seg)

    # p = 0.5 path: result must equal either the flipped pair or the identity pair
    out_img_h, out_seg_h = RandomHorizontalFlip(p=0.5)(img, seg, k_coin)
    jax.block_until_ready(out_img_h)
    jax.block_until_ready(out_seg_h)
    is_flip = bool(jnp.allclose(out_img_h, ref_img, atol=1e-6)
                   and jnp.array_equal(out_seg_h, ref_seg))
    is_id = bool(jnp.allclose(out_img_h, img, atol=1e-6)
                 and jnp.array_equal(out_seg_h, seg))
    assert is_flip or is_id

    print("KERNEL_OK")
</pallas_src>

<mosaic_0001>
module attributes {stable_mosaic.version = 11 : i64} {
  func.func @kernel(%arg0: i32, %arg1: i32, %arg2: memref<1xi32, #tpu.memory_space<smem>>, %arg3: memref<24x128xf32, #tpu.memory_space<vmem>>, %arg4: memref<24x128xf32, #tpu.memory_space<vmem>>) attributes {dimension_semantics = [#tpu.dimension_semantics<parallel>, #tpu.dimension_semantics<parallel>], iteration_bounds = array<i64: 2, 2>, scalar_prefetch = 1 : i64, scratch_operands = 0 : i64, tpu.core_type = #tpu.core_type<tc>, window_params = [{transform_indices = @transform_0, window_bounds = array<i64: 24, 128>}, {transform_indices = @transform_1, window_bounds = array<i64: 24, 128>}]} {
    %c0 = arith.constant 0 : index
    %0 = memref.load %arg2[%c0] : memref<1xi32, #tpu.memory_space<smem>>
    %c0_i32 = arith.constant 0 : i32
    %1 = arith.cmpi eq, %0, %c0_i32 : i32
    %2 = arith.extui %1 : i1 to i32
    %c0_i32_0 = arith.constant 0 : i32
    %3 = arith.cmpi ne, %2, %c0_i32_0 : i32
    scf.if %3 {
      %c0_4 = arith.constant 0 : index
      %c0_5 = arith.constant 0 : index
      %8 = vector.load %arg3[%c0_4, %c0_5] : memref<24x128xf32, #tpu.memory_space<vmem>>, vector<24x128xf32>
      %c0_6 = arith.constant 0 : index
      %c0_7 = arith.constant 0 : index
      %9 = vector.load %arg4[%c0_6, %c0_7] : memref<24x128xf32, #tpu.memory_space<vmem>>, vector<24x128xf32>
      tpu.vector_store %arg4[%c0_6, %c0_7], %8 {strides = array<i32>} : memref<24x128xf32, #tpu.memory_space<vmem>>, vector<24x128xf32>,
    } else {
    }
    %c0_1 = arith.constant 0 : index
    %4 = memref.load %arg2[%c0_1] : memref<1xi32, #tpu.memory_space<smem>>
    %c0_i32_2 = arith.constant 0 : i32
    %5 = arith.cmpi ne, %4, %c0_i32_2 : i32
    %6 = arith.extui %5 : i1 to i32
    %c0_i32_3 = arith.constant 0 : i32
    %7 = arith.cmpi ne, %6, %c0_i32_3 : i32
    scf.if %7 {
      %8 = tpu.iota {dimensions = array<i32: 0>} : vector<128x128xi32>
      %9 = tpu.iota {dimensions = array<i32: 1>} : vector<128x128xi32>
      %10 = arith.addi %8, %9 : vector<128x128xi32>
      %c127_i32 = arith.constant 127 : i32
      %11 = vector.broadcast %c127_i32 : i32 to vector<128x128xi32>
      %12 = arith.cmpi eq, %10, %11 : vector<128x128xi32>
      %cst = arith.constant 1.000000e+00 : f32
      %cst_4 = arith.constant 0.000000e+00 : f32
      %13 = vector.broadcast %cst : f32 to vector<128x128xf32>
      %14 = vector.broadcast %cst_4 : f32 to vector<128x128xf32>
      %15 = arith.select %12, %13, %14 : vector<128x128xi1>, vector<128x128xf32>
      %c0_5 = arith.constant 0 : index
      %c0_6 = arith.constant 0 : index
      %16 = vector.load %arg3[%c0_5, %c0_6] : memref<24x128xf32, #tpu.memory_space<vmem>>, vector<24x128xf32>
      %cst_7 = arith.constant dense<0.000000e+00> : vector<24x128xf32>
      %17 = tpu.matmul %16, %15, %cst_7 {dimension_numbers = #tpu.dot_dimension_numbers<[1], [0], [0], [1], [0, 0, 1, 1], [], []>, precision = #tpu.contract_precision<fp32>} : vector<24x128xf32>, vector<128x128xf32>, vector<24x128xf32> -> vector<24x128xf32>
      %c0_8 = arith.constant 0 : index
      %c0_9 = arith.constant 0 : index
      %18 = vector.load %arg4[%c0_8, %c0_9] : memref<24x128xf32, #tpu.memory_space<vmem>>, vector<24x128xf32>
      tpu.vector_store %arg4[%c0_8, %c0_9], %17 {strides = array<i32>} : memref<24x128xf32, #tpu.memory_space<vmem>>, vector<24x128xf32>,
    } else {
    }
    return
  }
  func.func @transform_0(%arg0: i32, %arg1: i32, %arg2: memref<1xi32, #tpu.memory_space<smem>>) -> (i32, i32) {
    %c0 = arith.constant 0 : index
    %0 = memref.load %arg2[%c0] : memref<1xi32, #tpu.memory_space<smem>>
    %c2_i32 = arith.constant 2 : i32
    %1 = arith.muli %c2_i32, %arg1 : i32
    %c1_i32 = arith.constant 1 : i32
    %2 = arith.subi %c1_i32, %1 : i32
    %3 = arith.muli %0, %2 : i32
    %4 = arith.addi %arg1, %3 : i32
    %c0_i32 = arith.constant 0 : i32
    return %arg0, %4 : i32, i32
  }
  func.func @transform_1(%arg0: i32, %arg1: i32, %arg2: memref<1xi32, #tpu.memory_space<smem>>) -> (i32, i32) {
    %c0_i32 = arith.constant 0 : i32
    return %arg0, %arg1 : i32, i32
  }
}

</mosaic_0001>

<llo_original>
// kernel: tpu_custom_call.1
$region0: #{tpu_custom_call.1}
  #allocation0 [shape = 'u32[]', space=smem, size = 0x4, offset = 0x4, fixed_abs, tag = 'smem constant byte address 0x4 - core index']
  #allocation1 [shape = 'u32[144,128]{1,0:T(1,128)}', space=vmem, size = 0x12000, scoped, tag = 'internal scratch']
  #allocation2 [shape = 's32[1]{0}', space=sflag, size = 0x4, scoped, tag = 'scoped memory for tpu_custom_call.1']
  #allocation3 [shape = 's32[1]{0:T(128)S(6)}', space=smem, size = 0x200, scoped, tag = 'prefetched SMEM operand 0']
  %s0 = inlined_call_operand.<no memory space> [shape: s32[1], index: 0, kind: input, shape index: {}]
  %s1 = inlined_call_operand.hbm [shape: f32[48,256], index: 1, kind: input, shape index: {}]
  %s2 = inlined_call_operand.hbm [shape: f32[48,256], index: 2, kind: output, shape index: {}]
  %s3 = sld [smem:[#allocation0]]
  $region49: #{tpu_custom_call.1} parent=0
    _
  %s5 = ssub.s32 1, %s3
  %s6 = scalar_select 0, %s5, %s3
  %7 = sst [smem:[#allocation3]] %s0
  $region1: #{tpu_custom_call.1} parent=0
    #allocation4 [shape = 'u8[24576]{0}', space=vmem, size = 0x6000, scoped, tag = 'input window, operand 1']
    #allocation5 [shape = 's32[2]{0}', space=sflag, size = 0x8, scoped, tag = 'scoped memory for tpu_custom_call.1']
    #allocation6 [shape = 's32[2]{0}', space=sflag, size = 0x8, scoped, tag = 'scoped memory for tpu_custom_call.1']
    #allocation7 [shape = 'u8[24576]{0}', space=vmem, size = 0x6000, scoped, tag = 'output window, operand 0']
    %8 = vsyncpa [#allocation5], 0
    %s9 = scalar_lea.sflag [#allocation5], 1
    %10 = vsyncpa %s9, 0
    %11 = vsyncpa [#allocation6], 0
    %s12 = scalar_lea.sflag [#allocation6], 1
    %13 = vsyncpa %s12, 0
    loop: start=0, step=1, limit=6
    $region2: #{tpu_custom_call.1} parent=1 // loop_pre_header
      _
    $region3: #{tpu_custom_call.1} parent=1 // loop_header
      %s15 = sphi 0, %s19
      %p16 = scmp.ge.s32.totalorder %s15, 6
      %s22 = sphi 0, %s34
      %s23 = sphi 0, %s30
      %s24 = sphi 0, %s22
      %s25 = sphi 0, %s23
      %s26 = sphi 0, %s24
      %s27 = sphi 0, %s25
      %s49 = sphi 0, %s51
      %s52 = sphi 0, %s49
      %s53 = sphi 0, %s52
      %s69 = sphi 0, %s53
      %s77 = sphi 0, %s79
      %s80 = sphi 0, %s77
      %s81 = sphi 0, %s80
      %s97 = sphi 0, %s81
    $region4: #{tpu_custom_call.1} parent=1 // loop_header_branch
      %18 = sbr.rel (%p16) target = $region8
    $region5: #{tpu_custom_call.1} parent=1 // loop_body
      %s20 = ssub.s32 %s15, 1
      %s21 = ssub.s32 %s15, 2
      %s28 = sadd.s32 1, %s23
      %p29 = scmp.ge.s32.totalorder %s28, 2
      %s30 = scalar_select %p29, 0, %s28
      %s31 = sadd.s32 1, %s22
      %s32 = scalar_select %p29, %s31, %s22
      %p33 = scmp.ge.s32.totalorder %s32, 2
      %s34 = scalar_select %p33, 0, %s32
      %s35 = sld [smem:[#allocation3]]
      %s36 = smul.u32 %s23, 2
      %s37 = ssub.s32 1, %s36
      %s38 = smul.u32 %s35, %s37
      %s39 = sadd.s32 %s23, %s38
      %s40 = sld [smem:[#allocation3]]
      %s41 = smul.u32 %s30, 2
      %s42 = ssub.s32 1, %s41
      %s43 = smul.u32 %s40, %s42
      %s44 = sadd.s32 %s30, %s43
      %s45 = ssub.s32 %s22, %s34
      %s46 = ssub.s32 %s39, %s44
      %s47 = sor.u32 %s45, %s46
      %p48 = scmp.eq.s32.totalorder %s47, 0
      %s50 = sadd.s32 %s49, 1
      %s51 = scalar_select %p48, %s49, %s50
      %p54 = pneg %p48
      %p55 = scmp.eq.s32.totalorder %s15, 3
      %p56 = por %p54, %p55
      %p57 = scmp.ne.s32.totalorder %s49, %s52
      %p58 = scmp.eq.s32.totalorder %s15, 0
      %p59 = por %p57, %p58
      %p60 = scmp.ne.s32.totalorder %s49, %s52
      %p61 = scmp.eq.s32.totalorder %s20, 3
      %p62 = por %p60, %p61
      %p63 = scmp.ne.s32.totalorder %s52, %s53
      %p64 = scmp.eq.s32.totalorder %s20, 0
      %p65 = por %p63, %p64
      %p66 = scmp.ne.s32.totalorder %s52, %s53
      %p67 = scmp.eq.s32.totalorder %s21, 3
      %p68 = por %p66, %p67
      %p70 = scmp.ne.s32.totalorder %s53, %s69
      %p71 = scmp.eq.s32.totalorder %s21, 0
      %p72 = por %p70, %p71
      %s73 = ssub.s32 %s22, %s34
      %s74 = ssub.s32 %s23, %s30
      %s75 = sor.u32 %s73, %s74
      %p76 = scmp.eq.s32.totalorder %s75, 0
      %s78 = sadd.s32 %s77, 1
      %s79 = scalar_select %p76, %s77, %s78
      %p82 = pneg %p76
      %p83 = scmp.eq.s32.totalorder %s15, 3
      %p84 = por %p82, %p83
      %p85 = scmp.ne.s32.totalorder %s77, %s80
      %p86 = scmp.eq.s32.totalorder %s15, 0
      %p87 = por %p85, %p86
      %p88 = scmp.ne.s32.totalorder %s77, %s80
      %p89 = scmp.eq.s32.totalorder %s20, 3
      %p90 = por %p88, %p89
      %p91 = scmp.ne.s32.totalorder %s80, %s81
      %p92 = scmp.eq.s32.totalorder %s20, 0
      %p93 = por %p91, %p92
      %p94 = scmp.ne.s32.totalorder %s80, %s81
      %p95 = scmp.eq.s32.totalorder %s21, 3
      %p96 = por %p94, %p95
      %p98 = scmp.ne.s32.totalorder %s81, %s97
      %p99 = scmp.eq.s32.totalorder %s21, 0
      %p100 = por %p98, %p99
      %p101 = scmp.le.s32.totalorder 1, %s15
      %p102 = scmp.lt.s32.totalorder %s15, 5
      %p103 = pnand %p101, %p102
      %p104 = pneg %p103
      // Predicated region
      $region9: #{tpu_custom_call.1} parent=5 // pred_check
        _
      $region10: #{tpu_custom_call.1} parent=5 // pred_check_branch
        %106 = sbr.rel (%p103) target = $region12
      $region11: #{tpu_custom_call.1} parent=5 // pred_region
        %s107 = ssub.s32 %s15, 1
      $region12: #{tpu_custom_call.1} parent=5 // pred_fallthru
        _
      %p108 = scmp.lt.s32.totalorder %s15, 4
      // Predicated region
      $region13: #{tpu_custom_call.1} parent=5 // pred_check
        %p109 = pneg %p108
      $region14: #{tpu_custom_call.1} parent=5 // pred_check_branch
        %111 = sbr.rel (%p109) target = $region16
      $region15: #{tpu_custom_call.1} parent=5 // pred_region
        // Predicated region
        $region17: #{tpu_custom_call.1} parent=15 // pred_check
          %p112 = pneg %p59
        $region18: #{tpu_custom_call.1} parent=15 // pred_check_branch
          %114 = sbr.rel (%p112) target = $region20
        $region19: #{tpu_custom_call.1} parent=15 // pred_region
          %s115 = sand.u32 %s49, 1
          %s116 = scalar_lea.sflag [#allocation5], %s115
          %s117 = sand.u32 %s49, 1
          %s118 = smul.addr %s117, 24
          %s119 = scalar_lea.vmem [#allocation4], %s118
          %s120 = sld [smem:[#allocation3]]
          %s121 = smul.u32 %s23, 2
          %s122 = ssub.s32 1, %s121
          %s123 = smul.u32 %s120, %s122
          %s124 = sadd.s32 %s23, %s123
          %s125 = smul.u32 3, %s22
          %s127 = ssub.s32 384, 384
          %128 = vsyncadd %s116, %s127
          %s129 = smul.addr %s125, 2
          %s130 = sadd.s32 %s124, %s129
          %s131 = smul.addr %s130, 128
          %s132 = scalar_lea.hbm %s1, %s131
          %s133 = sshll.u32 %s119, 4
          %s134 = int_to_ptr.vmem [resolvable:$true] %s133
          %139 = dma.hbm_to_vmem [thread:$0]  %s132, 384, %s134, %s116, 256, 128, 8
        $region20: #{tpu_custom_call.1} parent=15 // pred_fallthru
          _
      $region16: #{tpu_custom_call.1} parent=5 // pred_fallthru
        _
      %p140 = scmp.le.s32.totalorder 1, %s15
      %p141 = scmp.lt.s32.totalorder %s15, 5
      %p142 = pnand %p140, %p141
      %p143 = pneg %p142
      // Predicated region
      $region21: #{tpu_custom_call.1} parent=5 // pred_check
        _
      $region22: #{tpu_custom_call.1} parent=5 // pred_check_branch
        %145 = sbr.rel (%p142) target = $region24
      $region23: #{tpu_custom_call.1} parent=5 // pred_region
        %s146 = ssub.s32 %s15, 1
        %s147 = sand.u32 %s52, 1
        %s148 = scalar_lea.sflag [#allocation5], %s147
        %s149 = sand.u32 %s52, 1
        %s150 = smul.addr %s149, 24
        %s151 = scalar_lea.vmem [#allocation4], %s150
        // Predicated region
        $region25: #{tpu_custom_call.1} parent=23 // pred_check
          %p152 = pneg %p65
        $region26: #{tpu_custom_call.1} parent=23 // pred_check_branch
          %154 = sbr.rel (%p152) target = $region28
        $region27: #{tpu_custom_call.1} parent=23 // pred_region
          %155 = dma.done %s148, 384
        $region28: #{tpu_custom_call.1} parent=23 // pred_fallthru
          _
        %s156 = sand.u32 %s52, 1
        %s157 = scalar_lea.sflag [#allocation5], %s156
        %s158 = sand.u32 %s52, 1
        %s159 = smul.addr %s158, 24
        %s160 = scalar_lea.vmem [#allocation4], %s159
        %p161 = pneg %p65
        %p162 = pneg %p62
        %p163 = pneg %p93
        %p164 = pneg %p90
        %s165 = sand.u32 %s80, 1
        %s166 = scalar_lea.sflag [#allocation6], %s165
        %s167 = sand.u32 %s80, 1
        %s168 = smul.addr %s167, 24
        %s169 = scalar_lea.vmem [#allocation7], %s168
        %s170 = sld [smem:[#allocation3]]
        %s171 = smul.u32 %s25, 2
        %s172 = ssub.s32 1, %s171
        %s173 = smul.u32 %s170, %s172
        %s174 = sadd.s32 %s25, %s173
        %s175 = smul.u32 3, %s24
        %s176 = smul.u32 3, %s24
        %s177 = sld [smem:[#allocation3]]
        %p178 = scmp.eq.s32.totalorder %s177, 0
        // Predicated region
        $region29: #{tpu_custom_call.1} parent=23 // pred_check
          %p179 = pneg %p178
        $region30: #{tpu_custom_call.1} parent=23 // pred_check_branch
          %181 = sbr.rel (%p179) target = $region32
        $region31: #{tpu_custom_call.1} parent=23 // pred_region
          %v182 = vld [vmem:[%s151] sm:$0xff]
          %v183 = vld [vmem:[%s151 + $0x8] sm:$0xff]
          %v184 = vld [vmem:[%s151 + $0x10] sm:$0xff]
          %185 = vst [vmem:[%s169] sm:$0xff] %v182
          %186 = vst [vmem:[%s169 + $0x8] sm:$0xff] %v183
          %187 = vst [vmem:[%s169 + $0x10] sm:$0xff] %v184
        $region32: #{tpu_custom_call.1} parent=23 // pred_fallthru
          _
        %s188 = sld [smem:[#allocation3]]
        %p189 = scmp.ne.s32.totalorder %s188, 0
        // Predicated region
        $region33: #{tpu_custom_call.1} parent=23 // pred_check
          %p190 = pneg %p189
        $region34: #{tpu_custom_call.1} parent=23 // pred_check_branch
          %192 = sbr.rel (%p190) target = $region36
        $region35: #{tpu_custom_call.1} parent=23 // pred_region
          %v193 = vlaneseq
          %v194 = vshrl.u32 %v193, 7
          %v195 = vadd.s32 %v194, 8
          %v196 = vadd.s32 %v194, 16
          %v197 = vadd.s32 %v194, 24
          %v198 = vadd.s32 %v194, 32
          %v199 = vadd.s32 %v194, 40
          %v200 = vadd.s32 %v194, 48
          %v201 = vadd.s32 %v194, 56
          %v202 = vadd.s32 %v194, 64
          %v203 = vadd.s32 %v194, 72
          %v204 = vadd.s32 %v194, 80
          %v205 = vadd.s32 %v194, 88
          %v206 = vadd.s32 %v194, 96
          %v207 = vadd.s32 %v194, 104
          %v208 = vadd.s32 %v194, 112
          %v209 = vadd.s32 %v194, 120
          %v210 = vlaneseq
          %v211 = vand.u32 %v210, 127
          %v212 = vadd.s32 %v194, %v211
          %v213 = vadd.s32 %v195, %v211
          %v214 = vadd.s32 %v196, %v211
          %v215 = vadd.s32 %v197, %v211
          %v216 = vadd.s32 %v198, %v211
          %v217 = vadd.s32 %v199, %v211
          %v218 = vadd.s32 %v200, %v211
          %v219 = vadd.s32 %v201, %v211
          %v220 = vadd.s32 %v202, %v211
          %v221 = vadd.s32 %v203, %v211
          %v222 = vadd.s32 %v204, %v211
          %v223 = vadd.s32 %v205, %v211
          %v224 = vadd.s32 %v206, %v211
          %v225 = vadd.s32 %v207, %v211
          %v226 = vadd.s32 %v208, %v211
          %v227 = vadd.s32 %v209, %v211
          %vm228 = vcmp.eq.s32.totalorder %v212, 127
          %vm229 = vcmp.eq.s32.totalorder %v213, 127
          %vm230 = vcmp.eq.s32.totalorder %v214, 127
          %vm231 = vcmp.eq.s32.totalorder %v215, 127
          %vm232 = vcmp.eq.s32.totalorder %v216, 127
          %vm233 = vcmp.eq.s32.totalorder %v217, 127
          %vm234 = vcmp.eq.s32.totalorder %v218, 127
          %vm235 = vcmp.eq.s32.totalorder %v219, 127
          %vm236 = vcmp.eq.s32.totalorder %v220, 127
          %vm237 = vcmp.eq.s32.totalorder %v221, 127
          %vm238 = vcmp.eq.s32.totalorder %v222, 127
          %vm239 = vcmp.eq.s32.totalorder %v223, 127
          %vm240 = vcmp.eq.s32.totalorder %v224, 127
          %vm241 = vcmp.eq.s32.totalorder %v225, 127
          %vm242 = vcmp.eq.s32.totalorder %v226, 127
          %vm243 = vcmp.eq.s32.totalorder %v227, 127
          %v244 = vsel %vm228, 1.0, 0.0
          %v245 = vsel %vm229, 1.0, 0.0
          %v246 = vsel %vm230, 1.0, 0.0
          %v247 = vsel %vm231, 1.0, 0.0
          %v248 = vsel %vm232, 1.0, 0.0
          %v249 = vsel %vm233, 1.0, 0.0
          %v250 = vsel %vm234, 1.0, 0.0
          %v251 = vsel %vm235, 1.0, 0.0
          %v252 = vsel %vm236, 1.0, 0.0
          %v253 = vsel %vm237, 1.0, 0.0
          %v254 = vsel %vm238, 1.0, 0.0
          %v255 = vsel %vm239, 1.0, 0.0
          %v256 = vsel %vm240, 1.0, 0.0
          %v257 = vsel %vm241, 1.0, 0.0
          %v258 = vsel %vm242, 1.0, 0.0
          %v259 = vsel %vm243, 1.0, 0.0
          %v260 = vld [vmem:[%s151] sm:$0xff]
          %v261 = vld [vmem:[%s151 + $0x8] sm:$0xff]
          %v262 = vld [vmem:[%s151 + $0x10] sm:$0xff]
          %263 = vmatprep.subr.mxu0 0.0
          %264 = vmatpush1.msra.mxu0 %v244
          %265 = vmatprep.subr.mxu0 0.0
          %266 = vmatpush1.msra.mxu0 %v245
          %267 = vmatprep.subr.mxu0 0.0
          %268 = vmatpush1.msra.mxu0 %v246
          %269 = vmatprep.subr.mxu0 0.0
          %270 = vmatpush1.msra.mxu0 %v247
          %271 = vmatprep.subr.mxu0 0.0
          %272 = vmatpush1.msra.mxu0 %v248
          %273 = vmatprep.subr.mxu0 0.0
          %274 = vmatpush1.msra.mxu0 %v249
          %275 = vmatprep.subr.mxu0 0.0
          %276 = vmatpush1.msra.mxu0 %v250
          %277 = vmatprep.subr.mxu0 0.0
          %278 = vmatpush1.msra.mxu0 %v251
          %279 = vmatprep.subr.mxu0 0.0
          %280 = vmatpush1.msra.mxu0 %v252
          %281 = vmatprep.subr.mxu0 0.0
          %282 = vmatpush1.msra.mxu0 %v253
          %283 = vmatprep.subr.mxu0 0.0
          %284 = vmatpush1.msra.mxu0 %v254
          %285 = vmatprep.subr.mxu0 0.0
          %286 = vmatpush1.msra.mxu0 %v255
          %287 = vmatprep.subr.mxu0 0.0
          %288 = vmatpush1.msra.mxu0 %v256
          %289 = vmatprep.subr.mxu0 0.0
          %290 = vmatpush1.msra.mxu0 %v257
          %291 = vmatprep.subr.mxu0 0.0
          %292 = vmatpush1.msra.mxu0 %v258
          %293 = vmatprep.subr.mxu0 0.0
          %294 = vmatpush1.msra.mxu0 %v259
          %295 = vmatprep.subr.mxu0 0.0
          %296 = vmatpush1.msra.mxu0 0.0
          %297 = vmatprep.subr.mxu0 0.0
          %298 = vmatpush1.msra.mxu0 0.0
          %299 = vmatprep.subr.mxu0 0.0
          %300 = vmatpush1.msra.mxu0 0.0
          %301 = vmatprep.subr.mxu0 0.0
          %302 = vmatpush1.msra.mxu0 0.0
          %303 = vmatprep.subr.mxu0 0.0
          %304 = vmatpush1.msra.mxu0 0.0
          %305 = vmatprep.subr.mxu0 0.0
          %306 = vmatpush1.msra.mxu0 0.0
          %307 = vmatprep.subr.mxu0 0.0
          %308 = vmatpush1.msra.mxu0 0.0
          %309 = vmatprep.subr.mxu0 0.0
          %310 = vmatpush1.msra.mxu0 0.0
          %311 = vmatprep.subr.mxu0 0.0
          %312 = vmatpush1.msra.mxu0 0.0
          %313 = vmatprep.subr.mxu0 0.0
          %314 = vmatpush1.msra.mxu0 0.0
          %315 = vmatprep.subr.mxu0 0.0
          %316 = vmatpush1.msra.mxu0 0.0
          %317 = vmatprep.subr.mxu0 0.0
          %318 = vmatpush1.msra.mxu0 0.0
          %319 = vmatprep.subr.mxu0 0.0
          %320 = vmatpush1.msra.mxu0 0.0
          %321 = vmatprep.subr.mxu0 0.0
          %322 = vmatpush1.msra.mxu0 0.0
          %323 = vmatprep.subr.mxu0 0.0
          %324 = vmatpush1.msra.mxu0 0.0
          %325 = vmatprep.subr.mxu0 0.0
          %326 = vmatpush1.msra.mxu0 0.0
          %327 = vmatprep.mubr.f32.mxu0 0.0
          %v328 = vand.u32 %v260, 4294901760
          %v329 = vsub.f32 %v260, %v328
          %v330 = vand.u32 %v329, 4294901760
          %v331 = vsub.f32 %v329, %v330
          %v332 = vand.u32 %v331, 4294901760
          %333 = vmatmul.mubr.f32.gmra.mrb[0].mxu0 %v332
          %v334 = vpop.f32.mrb[0].mxu0
          %v335 = vadd.f32 0.0, %v334
          %v336 = vpop.f32.mrb[0].mxu0
          %337 = vmatprep.mubr.f32.mxu0 0.0
          %v338 = vand.u32 %v261, 4294901760
          %v339 = vsub.f32 %v261, %v338
          %v340 = vand.u32 %v339, 4294901760
          %v341 = vsub.f32 %v339, %v340
          %v342 = vand.u32 %v341, 4294901760
          %343 = vmatmul.mubr.f32.gmra.mrb[0].mxu0 %v342
          %v344 = vpop.f32.mrb[0].mxu0
          %v345 = vadd.f32 0.0, %v344
          %v346 = vpop.f32.mrb[0].mxu0
          %347 = vmatprep.mubr.f32.mxu0 0.0
          %v348 = vand.u32 %v262, 4294901760
          %v349 = vsub.f32 %v262, %v348
          %v350 = vand.u32 %v349, 4294901760
          %v351 = vsub.f32 %v349, %v350
          %v352 = vand.u32 %v351, 4294901760
          %353 = vmatmul.mubr.f32.gmra.mrb[0].mxu0 %v352
          %v354 = vpop.f32.mrb[0].mxu0
          %v355 = vadd.f32 0.0, %v354
          %v356 = vpop.f32.mrb[0].mxu0
          %357 = vdwg.mxu0
          %358 = vmatprep.subr.mxu0 0.0
          %v359 = vsub.f32 %v244, %v244
          %v360 = vand.u32 %v359, 4294901760
          %v361 = vsub.f32 %v359, %v360
          %v362 = vand.u32 %v361, 4294901760
          %363 = vmatpush1.msra.mxu0 %v362
          %364 = vmatprep.subr.mxu0 0.0
          %v365 = vsub.f32 %v245, %v245
          %v366 = vand.u32 %v365, 4294901760
          %v367 = vsub.f32 %v365, %v366
          %v368 = vand.u32 %v367, 4294901760
          %369 = vmatpush1.msra.mxu0 %v368
          %370 = vmatprep.subr.mxu0 0.0
          %v371 = vsub.f32 %v246, %v246
          %v372 = vand.u32 %v371, 4294901760
          %v373 = vsub.f32 %v371, %v372
          %v374 = vand.u32 %v373, 4294901760
          %375 = vmatpush1.msra.mxu0 %v374
          %376 = vmatprep.subr.mxu0 0.0
          %v377 = vsub.f32 %v247, %v247
          %v378 = vand.u32 %v377, 4294901760
          %v379 = vsub.f32 %v377, %v378
          %v380 = vand.u32 %v379, 4294901760
          %381 = vmatpush1.msra.mxu0 %v380
          %382 = vmatprep.subr.mxu0 0.0
          %v383 = vsub.f32 %v248, %v248
          %v384 = vand.u32 %v383, 4294901760
          %v385 = vsub.f32 %v383, %v384
          %v386 = vand.u32 %v385, 4294901760
          %387 = vmatpush1.msra.mxu0 %v386
          %388 = vmatprep.subr.mxu0 0.0
          %v389 = vsub.f32 %v249, %v249
          %v390 = vand.u32 %v389, 4294901760
          %v391 = vsub.f32 %v389, %v390
          %v392 = vand.u32 %v391, 4294901760
          %393 = vmatpush1.msra.mxu0 %v392
          %394 = vmatprep.subr.mxu0 0.0
          %v395 = vsub.f32 %v250, %v250
          %v396 = vand.u32 %v395, 4294901760
          %v397 = vsub.f32 %v395, %v396
          %v398 = vand.u32 %v397, 4294901760
          %399 = vmatpush1.msra.mxu0 %v398
          %400 = vmatprep.subr.mxu0 0.0
          %v401 = vsub.f32 %v251, %v251
          %v402 = vand.u32 %v401, 4294901760
          %v403 = vsub.f32 %v401, %v402
          %v404 = vand.u32 %v403, 4294901760
          %405 = vmatpush1.msra.mxu0 %v404
          %406 = vmatprep.subr.mxu0 0.0
          %v407 = vsub.f32 %v252, %v252
          %v408 = vand.u32 %v407, 4294901760
          %v409 = vsub.f32 %v407, %v408
          %v410 = vand.u32 %v409, 4294901760
          %411 = vmatpush1.msra.mxu0 %v410
          %412 = vmatprep.subr.mxu0 0.0
          %v413 = vsub.f32 %v253, %v253
          %v414 = vand.u32 %v413, 4294901760
          %v415 = vsub.f32 %v413, %v414
          %v416 = vand.u32 %v415, 4294901760
          %417 = vmatpush1.msra.mxu0 %v416
          %418 = vmatprep.subr.mxu0 0.0
          %v419 = vsub.f32 %v254, %v254
          %v420 = vand.u32 %v419, 4294901760
          %v421 = vsub.f32 %v419, %v420
          %v422 = vand.u32 %v421, 4294901760
          %423 = vmatpush1.msra.mxu0 %v422
          %424 = vmatprep.subr.mxu0 0.0
          %v425 = vsub.f32 %v255, %v255
          %v426 = vand.u32 %v425, 4294901760
          %v427 = vsub.f32 %v425, %v426
          %v428 = vand.u32 %v427, 4294901760
          %429 = vmatpush1.msra.mxu0 %v428
          %430 = vmatprep.subr.mxu0 0.0
          %v431 = vsub.f32 %v256, %v256
          %v432 = vand.u32 %v431, 4294901760
          %v433 = vsub.f32 %v431, %v432
          %v434 = vand.u32 %v433, 4294901760
          %435 = vmatpush1.msra.mxu0 %v434
          %436 = vmatprep.subr.mxu0 0.0
          %v437 = vsub.f32 %v257, %v257
          %v438 = vand.u32 %v437, 4294901760
          %v439 = vsub.f32 %v437, %v438
          %v440 = vand.u32 %v439, 4294901760
          %441 = vmatpush1.msra.mxu0 %v440
          %442 = vmatprep.subr.mxu0 0.0
          %v443 = vsub.f32 %v258, %v258
          %v444 = vand.u32 %v443, 4294901760
          %v445 = vsub.f32 %v443, %v444
          %v446 = vand.u32 %v445, 4294901760
          %447 = vmatpush1.msra.mxu0 %v446
          %448 = vmatprep.subr.mxu0 0.0
          %v449 = vsub.f32 %v259, %v259
          %v450 = vand.u32 %v449, 4294901760
          %v451 = vsub.f32 %v449, %v450
          %v452 = vand.u32 %v451, 4294901760
          %453 = vmatpush1.msra.mxu0 %v452
          %454 = vmatprep.subr.mxu0 0.0
          %455 = vmatpush1.msra.mxu0 0.0
          %456 = vmatprep.subr.mxu0 0.0
          %457 = vmatpush1.msra.mxu0 0.0
          %458 = vmatprep.subr.mxu0 0.0
          %459 = vmatpush1.msra.mxu0 0.0
          %460 = vmatprep.subr.mxu0 0.0
          %461 = vmatpush1.msra.mxu0 0.0
          %462 = vmatprep.subr.mxu0 0.0
          %463 = vmatpush1.msra.mxu0 0.0
          %464 = vmatprep.subr.mxu0 0.0
          %465 = vmatpush1.msra.mxu0 0.0
          %466 = vmatprep.subr.mxu0 0.0
          %467 = vmatpush1.msra.mxu0 0.0
          %468 = vmatprep.subr.mxu0 0.0
          %469 = vmatpush1.msra.mxu0 0.0
          %470 = vmatprep.subr.mxu0 0.0
          %471 = vmatpush1.msra.mxu0 0.0
          %472 = vmatprep.subr.mxu0 0.0
          %473 = vmatpush1.msra.mxu0 0.0
          %474 = vmatprep.subr.mxu0 0.0
          %475 = vmatpush1.msra.mxu0 0.0
          %476 = vmatprep.subr.mxu0 0.0
          %477 = vmatpush1.msra.mxu0 0.0
          %478 = vmatprep.subr.mxu0 0.0
          %479 = vmatpush1.msra.mxu0 0.0
          %480 = vmatprep.subr.mxu0 0.0
          %481 = vmatpush1.msra.mxu0 0.0
          %482 = vmatprep.subr.mxu0 0.0
          %483 = vmatpush1.msra.mxu0 0.0
          %484 = vmatprep.subr.mxu0 0.0
          %485 = vmatpush1.msra.mxu0 0.0
          %486 = vmatprep.mubr.f32.mxu0 0.0
          %v487 = vand.u32 %v260, 4294901760
          %488 = vmatmul.mubr.f32.gmra.mrb[0].mxu0 %v487
          %v489 = vpop.f32.mrb[0].mxu0
          %v490 = vadd.f32 %v335, %v489
          %v491 = vpop.f32.mrb[0].mxu0
          %492 = vmatprep.mubr.f32.mxu0 0.0
          %v493 = vand.u32 %v261, 4294901760
          %494 = vmatmul.mubr.f32.gmra.mrb[0].mxu0 %v493
          %v495 = vpop.f32.mrb[0].mxu0
          %v496 = vadd.f32 %v345, %v495
          %v497 = vpop.f32.mrb[0].mxu0
          %498 = vmatprep.mubr.f32.mxu0 0.0
          %v499 = vand.u32 %v262, 4294901760
          %500 = vmatmul.mubr.f32.gmra.mrb[0].mxu0 %v499
          %v501 = vpop.f32.mrb[0].mxu0
          %v502 = vadd.f32 %v355, %v501
          %v503 = vpop.f32.mrb[0].mxu0
          %504 = vdwg.mxu0
          %505 = vmatprep.subr.mxu0 0.0
          %v506 = vsub.f32 %v244, %v244
          %507 = vmatpush1.msra.mxu0 %v506
          %508 = vmatprep.subr.mxu0 0.0
          %v509 = vsub.f32 %v245, %v245
          %510 = vmatpush1.msra.mxu0 %v509
          %511 = vmatprep.subr.mxu0 0.0
          %v512 = vsub.f32 %v246, %v246
          %513 = vmatpush1.msra.mxu0 %v512
          %514 = vmatprep.subr.mxu0 0.0
          %v515 = vsub.f32 %v247, %v247
          %516 = vmatpush1.msra.mxu0 %v515
          %517 = vmatprep.subr.mxu0 0.0
          %v518 = vsub.f32 %v248, %v248
          %519 = vmatpush1.msra.mxu0 %v518
          %520 = vmatprep.subr.mxu0 0.0
          %v521 = vsub.f32 %v249, %v249
          %522 = vmatpush1.msra.mxu0 %v521
          %523 = vmatprep.subr.mxu0 0.0
          %v524 = vsub.f32 %v250, %v250
          %525 = vmatpush1.msra.mxu0 %v524
          %526 = vmatprep.subr.mxu0 0.0
          %v527 = vsub.f32 %v251, %v251
          %528 = vmatpush1.msra.mxu0 %v527
          %529 = vmatprep.subr.mxu0 0.0
          %v530 = vsub.f32 %v252, %v252
          %531 = vmatpush1.msra.mxu0 %v530
          %532 = vmatprep.subr.mxu0 0.0
          %v533 = vsub.f32 %v253, %v253
          %534 = vmatpush1.msra.mxu0 %v533
          %535 = vmatprep.subr.mxu0 0.0
          %v536 = vsub.f32 %v254, %v254
          %537 = vmatpush1.msra.mxu0 %v536
          %538 = vmatprep.subr.mxu0 0.0
          %v539 = vsub.f32 %v255, %v255
          %540 = vmatpush1.msra.mxu0 %v539
          %541 = vmatprep.subr.mxu0 0.0
          %v542 = vsub.f32 %v256, %v256
          %543 = vmatpush1.msra.mxu0 %v542
          %544 = vmatprep.subr.mxu0 0.0
          %v545 = vsub.f32 %v257, %v257
          %546 = vmatpush1.msra.mxu0 %v545
          %547 = vmatprep.subr.mxu0 0.0
          %v548 = vsub.f32 %v258, %v258
          %549 = vmatpush1.msra.mxu0 %v548
          %550 = vmatprep.subr.mxu0 0.0
          %v551 = vsub.f32 %v259, %v259
          %552 = vmatpush1.msra.mxu0 %v551
          %553 = vmatprep.subr.mxu0 0.0
          %554 = vmatpush1.msra.mxu0 0.0
          %555 = vmatprep.subr.mxu0 0.0
          %556 = vmatpush1.msra.mxu0 0.0
          %557 = vmatprep.subr.mxu0 0.0
          %558 = vmatpush1.msra.mxu0 0.0
          %559 = vmatprep.subr.mxu0 0.0
          %560 = vmatpush1.msra.mxu0 0.0
          %561 = vmatprep.subr.mxu0 0.0
          %562 = vmatpush1.msra.mxu0 0.0
          %563 = vmatprep.subr.mxu0 0.0
          %564 = vmatpush1.msra.mxu0 0.0
          %565 = vmatprep.subr.mxu0 0.0
          %566 = vmatpush1.msra.mxu0 0.0
          %567 = vmatprep.subr.mxu0 0.0
          %568 = vmatpush1.msra.mxu0 0.0
          %569 = vmatprep.subr.mxu0 0.0
          %570 = vmatpush1.msra.mxu0 0.0
          %571 = vmatprep.subr.mxu0 0.0
          %572 = vmatpush1.msra.mxu0 0.0
          %573 = vmatprep.subr.mxu0 0.0
          %574 = vmatpush1.msra.mxu0 0.0
          %575 = vmatprep.subr.mxu0 0.0
          %576 = vmatpush1.msra.mxu0 0.0
          %577 = vmatprep.subr.mxu0 0.0
          %578 = vmatpush1.msra.mxu0 0.0
          %579 = vmatprep.subr.mxu0 0.0
          %580 = vmatpush1.msra.mxu0 0.0
          %581 = vmatprep.subr.mxu0 0.0
          %582 = vmatpush1.msra.mxu0 0.0
          %583 = vmatprep.subr.mxu0 0.0
          %584 = vmatpush1.msra.mxu0 0.0
          %585 = vmatprep.mubr.f32.mxu0 0.0
          %v586 = vand.u32 %v260, 4294901760
          %v587 = vsub.f32 %v260, %v586
          %588 = vmatmul.mubr.f32.gmra.mrb[0].mxu0 %v587
          %v589 = vpop.f32.mrb[0].mxu0
          %v590 = vadd.f32 %v490, %v589
          %v591 = vpop.f32.mrb[0].mxu0
          %592 = vmatprep.mubr.f32.mxu0 0.0
          %v593 = vand.u32 %v261, 4294901760
          %v594 = vsub.f32 %v261, %v593
          %595 = vmatmul.mubr.f32.gmra.mrb[0].mxu0 %v594
          %v596 = vpop.f32.mrb[0].mxu0
          %v597 = vadd.f32 %v496, %v596
          %v598 = vpop.f32.mrb[0].mxu0
          %599 = vmatprep.mubr.f32.mxu0 0.0
          %v600 = vand.u32 %v262, 4294901760
          %v601 = vsub.f32 %v262, %v600
          %602 = vmatmul.mubr.f32.gmra.mrb[0].mxu0 %v601
          %v603 = vpop.f32.mrb[0].mxu0
          %v604 = vadd.f32 %v502, %v603
          %v605 = vpop.f32.mrb[0].mxu0
          %606 = vdwg.mxu0
          %607 = vmatprep.subr.mxu0 0.0
          %608 = vmatpush1.msra.mxu0 %v244
          %609 = vmatprep.subr.mxu0 0.0
          %610 = vmatpush1.msra.mxu0 %v245
          %611 = vmatprep.subr.mxu0 0.0
          %612 = vmatpush1.msra.mxu0 %v246
          %613 = vmatprep.subr.mxu0 0.0
          %614 = vmatpush1.msra.mxu0 %v247
          %615 = vmatprep.subr.mxu0 0.0
          %616 = vmatpush1.msra.mxu0 %v248
          %617 = vmatprep.subr.mxu0 0.0
          %618 = vmatpush1.msra.mxu0 %v249
          %619 = vmatprep.subr.mxu0 0.0
          %620 = vmatpush1.msra.mxu0 %v250
          %621 = vmatprep.subr.mxu0 0.0
          %622 = vmatpush1.msra.mxu0 %v251
          %623 = vmatprep.subr.mxu0 0.0
          %624 = vmatpush1.msra.mxu0 %v252
          %625 = vmatprep.subr.mxu0 0.0
          %626 = vmatpush1.msra.mxu0 %v253
          %627 = vmatprep.subr.mxu0 0.0
          %628 = vmatpush1.msra.mxu0 %v254
          %629 = vmatprep.subr.mxu0 0.0
          %630 = vmatpush1.msra.mxu0 %v255
          %631 = vmatprep.subr.mxu0 0.0
          %632 = vmatpush1.msra.mxu0 %v256
          %633 = vmatprep.subr.mxu0 0.0
          %634 = vmatpush1.msra.mxu0 %v257
          %635 = vmatprep.subr.mxu0 0.0
          %636 = vmatpush1.msra.mxu0 %v258
          %637 = vmatprep.subr.mxu0 0.0
          %638 = vmatpush1.msra.mxu0 %v259
          %639 = vmatprep.subr.mxu0 0.0
          %640 = vmatpush1.msra.mxu0 0.0
          %641 = vmatprep.subr.mxu0 0.0
          %642 = vmatpush1.msra.mxu0 0.0
          %643 = vmatprep.subr.mxu0 0.0
          %644 = vmatpush1.msra.mxu0 0.0
          %645 = vmatprep.subr.mxu0 0.0
          %646 = vmatpush1.msra.mxu0 0.0
          %647 = vmatprep.subr.mxu0 0.0
          %648 = vmatpush1.msra.mxu0 0.0
          %649 = vmatprep.subr.mxu0 0.0
          %650 = vmatpush1.msra.mxu0 0.0
          %651 = vmatprep.subr.mxu0 0.0
          %652 = vmatpush1.msra.mxu0 0.0
          %653 = vmatprep.subr.mxu0 0.0
          %654 = vmatpush1.msra.mxu0 0.0
          %655 = vmatprep.subr.mxu0 0.0
          %656 = vmatpush1.msra.mxu0 0.0
          %657 = vmatprep.subr.mxu0 0.0
          %658 = vmatpush1.msra.mxu0 0.0
          %659 = vmatprep.subr.mxu0 0.0
          %660 = vmatpush1.msra.mxu0 0.0
          %661 = vmatprep.subr.mxu0 0.0
          %662 = vmatpush1.msra.mxu0 0.0
          %663 = vmatprep.subr.mxu0 0.0
          %664 = vmatpush1.msra.mxu0 0.0
          %665 = vmatprep.subr.mxu0 0.0
          %666 = vmatpush1.msra.mxu0 0.0
          %667 = vmatprep.subr.mxu0 0.0
          %668 = vmatpush1.msra.mxu0 0.0
          %669 = vmatprep.subr.mxu0 0.0
          %670 = vmatpush1.msra.mxu0 0.0
          %671 = vmatprep.mubr.f32.mxu0 0.0
          %v672 = vand.u32 %v260, 4294901760
          %v673 = vsub.f32 %v260, %v672
          %v674 = vand.u32 %v673, 4294901760
          %675 = vmatmul.mubr.f32.gmra.mrb[0].mxu0 %v674
          %v676 = vpop.f32.mrb[0].mxu0
          %v677 = vadd.f32 %v590, %v676
          %v678 = vpop.f32.mrb[0].mxu0
          %679 = vmatprep.mubr.f32.mxu0 0.0
          %v680 = vand.u32 %v261, 4294901760
          %v681 = vsub.f32 %v261, %v680
          %v682 = vand.u32 %v681, 4294901760
          %683 = vmatmul.mubr.f32.gmra.mrb[0].mxu0 %v682
          %v684 = vpop.f32.mrb[0].mxu0
          %v685 = vadd.f32 %v597, %v684
          %v686 = vpop.f32.mrb[0].mxu0
          %687 = vmatprep.mubr.f32.mxu0 0.0
          %v688 = vand.u32 %v262, 4294901760
          %v689 = vsub.f32 %v262, %v688
          %v690 = vand.u32 %v689, 4294901760
          %691 = vmatmul.mubr.f32.gmra.mrb[0].mxu0 %v690
          %v692 = vpop.f32.mrb[0].mxu0
          %v693 = vadd.f32 %v604, %v692
          %v694 = vpop.f32.mrb[0].mxu0
          %695 = vdwg.mxu0
          %696 = vmatprep.subr.mxu0 0.0
          %v697 = vsub.f32 %v244, %v244
          %v698 = vand.u32 %v697, 4294901760
          %699 = vmatpush1.msra.mxu0 %v698
          %700 = vmatprep.subr.mxu0 0.0
          %v701 = vsub.f32 %v245, %v245
          %v702 = vand.u32 %v701, 4294901760
          %703 = vmatpush1.msra.mxu0 %v702
          %704 = vmatprep.subr.mxu0 0.0
          %v705 = vsub.f32 %v246, %v246
          %v706 = vand.u32 %v705, 4294901760
          %707 = vmatpush1.msra.mxu0 %v706
          %708 = vmatprep.subr.mxu0 0.0
          %v709 = vsub.f32 %v247, %v247
          %v710 = vand.u32 %v709, 4294901760
          %711 = vmatpush1.msra.mxu0 %v710
          %712 = vmatprep.subr.mxu0 0.0
          %v713 = vsub.f32 %v248, %v248
          %v714 = vand.u32 %v713, 4294901760
          %715 = vmatpush1.msra.mxu0 %v714
          %716 = vmatprep.subr.mxu0 0.0
          %v717 = vsub.f32 %v249, %v249
          %v718 = vand.u32 %v717, 4294901760
          %719 = vmatpush1.msra.mxu0 %v718
          %720 = vmatprep.subr.mxu0 0.0
          %v721 = vsub.f32 %v250, %v250
          %v722 = vand.u32 %v721, 4294901760
          %723 = vmatpush1.msra.mxu0 %v722
          %724 = vmatprep.subr.mxu0 0.0
          %v725 = vsub.f32 %v251, %v251
          %v726 = vand.u32 %v725, 4294901760
          %727 = vmatpush1.msra.mxu0 %v726
          %728 = vmatprep.subr.mxu0 0.0
          %v729 = vsub.f32 %v252, %v252
          %v730 = vand.u32 %v729, 4294901760
          %731 = vmatpush1.msra.mxu0 %v730
          %732 = vmatprep.subr.mxu0 0.0
          %v733 = vsub.f32 %v253, %v253
          %v734 = vand.u32 %v733, 4294901760
          %735 = vmatpush1.msra.mxu0 %v734
          %736 = vmatprep.subr.mxu0 0.0
          %v737 = vsub.f32 %v254, %v254
          %v738 = vand.u32 %v737, 4294901760
          %739 = vmatpush1.msra.mxu0 %v738
          %740 = vmatprep.subr.mxu0 0.0
          %v741 = vsub.f32 %v255, %v255
          %v742 = vand.u32 %v741, 4294901760
          %743 = vmatpush1.msra.mxu0 %v742
          %744 = vmatprep.subr.mxu0 0.0
          %v745 = vsub.f32 %v256, %v256
          %v746 = vand.u32 %v745, 4294901760
          %747 = vmatpush1.msra.mxu0 %v746
          %748 = vmatprep.subr.mxu0 0.0
          %v749 = vsub.f32 %v257, %v257
          %v750 = vand.u32 %v749, 4294901760
          %751 = vmatpush1.msra.mxu0 %v750
          %752 = vmatprep.subr.mxu0 0.0
          %v753 = vsub.f32 %v258, %v258
          %v754 = vand.u32 %v753, 4294901760
          %755 = vmatpush1.msra.mxu0 %v754
          %756 = vmatprep.subr.mxu0 0.0
          %v757 = vsub.f32 %v259, %v259
          %v758 = vand.u32 %v757, 4294901760
          %759 = vmatpush1.msra.mxu0 %v758
          %760 = vmatprep.subr.mxu0 0.0
          %761 = vmatpush1.msra.mxu0 0.0
          %762 = vmatprep.subr.mxu0 0.0
          %763 = vmatpush1.msra.mxu0 0.0
          %764 = vmatprep.subr.mxu0 0.0
          %765 = vmatpush1.msra.mxu0 0.0
          %766 = vmatprep.subr.mxu0 0.0
          %767 = vmatpush1.msra.mxu0 0.0
          %768 = vmatprep.subr.mxu0 0.0
          %769 = vmatpush1.msra.mxu0 0.0
          %770 = vmatprep.subr.mxu0 0.0
          %771 = vmatpush1.msra.mxu0 0.0
          %772 = vmatprep.subr.mxu0 0.0
          %773 = vmatpush1.msra.mxu0 0.0
          %774 = vmatprep.subr.mxu0 0.0
          %775 = vmatpush1.msra.mxu0 0.0
          %776 = vmatprep.subr.mxu0 0.0
          %777 = vmatpush1.msra.mxu0 0.0
          %778 = vmatprep.subr.mxu0 0.0
          %779 = vmatpush1.msra.mxu0 0.0
          %780 = vmatprep.subr.mxu0 0.0
          %781 = vmatpush1.msra.mxu0 0.0
          %782 = vmatprep.subr.mxu0 0.0
          %783 = vmatpush1.msra.mxu0 0.0
          %784 = vmatprep.subr.mxu0 0.0
          %785 = vmatpush1.msra.mxu0 0.0
          %786 = vmatprep.subr.mxu0 0.0
          %787 = vmatpush1.msra.mxu0 0.0
          %788 = vmatprep.subr.mxu0 0.0
          %789 = vmatpush1.msra.mxu0 0.0
          %790 = vmatprep.subr.mxu0 0.0
          %791 = vmatpush1.msra.mxu0 0.0
          %792 = vmatprep.mubr.f32.mxu0 0.0
          %v793 = vand.u32 %v260, 4294901760
          %794 = vmatmul.mubr.f32.gmra.mrb[0].mxu0 %v793
          %v795 = vpop.f32.mrb[0].mxu0
          %v796 = vadd.f32 %v677, %v795
          %v797 = vpop.f32.mrb[0].mxu0
          %798 = vmatprep.mubr.f32.mxu0 0.0
          %v799 = vand.u32 %v261, 4294901760
          %800 = vmatmul.mubr.f32.gmra.mrb[0].mxu0 %v799
          %v801 = vpop.f32.mrb[0].mxu0
          %v802 = vadd.f32 %v685, %v801
          %v803 = vpop.f32.mrb[0].mxu0
          %804 = vmatprep.mubr.f32.mxu0 0.0
          %v805 = vand.u32 %v262, 4294901760
          %806 = vmatmul.mubr.f32.gmra.mrb[0].mxu0 %v805
          %v807 = vpop.f32.mrb[0].mxu0
          %v808 = vadd.f32 %v693, %v807
          %v809 = vpop.f32.mrb[0].mxu0
          %810 = vdwg.mxu0
          %811 = vmatprep.subr.mxu0 0.0
          %812 = vmatpush1.msra.mxu0 %v244
          %813 = vmatprep.subr.mxu0 0.0
          %814 = vmatpush1.msra.mxu0 %v245
          %815 = vmatprep.subr.mxu0 0.0
          %816 = vmatpush1.msra.mxu0 %v246
          %817 = vmatprep.subr.mxu0 0.0
          %818 = vmatpush1.msra.mxu0 %v247
          %819 = vmatprep.subr.mxu0 0.0
          %820 = vmatpush1.msra.mxu0 %v248
          %821 = vmatprep.subr.mxu0 0.0
          %822 = vmatpush1.msra.mxu0 %v249
          %823 = vmatprep.subr.mxu0 0.0
          %824 = vmatpush1.msra.mxu0 %v250
          %825 = vmatprep.subr.mxu0 0.0
          %826 = vmatpush1.msra.mxu0 %v251
          %827 = vmatprep.subr.mxu0 0.0
          %828 = vmatpush1.msra.mxu0 %v252
          %829 = vmatprep.subr.mxu0 0.0
          %830 = vmatpush1.msra.mxu0 %v253
          %831 = vmatprep.subr.mxu0 0.0
          %832 = vmatpush1.msra.mxu0 %v254
          %833 = vmatprep.subr.mxu0 0.0
          %834 = vmatpush1.msra.mxu0 %v255
          %835 = vmatprep.subr.mxu0 0.0
          %836 = vmatpush1.msra.mxu0 %v256
          %837 = vmatprep.subr.mxu0 0.0
          %838 = vmatpush1.msra.mxu0 %v257
          %839 = vmatprep.subr.mxu0 0.0
          %840 = vmatpush1.msra.mxu0 %v258
          %841 = vmatprep.subr.mxu0 0.0
          %842 = vmatpush1.msra.mxu0 %v259
          %843 = vmatprep.subr.mxu0 0.0
          %844 = vmatpush1.msra.mxu0 0.0
          %845 = vmatprep.subr.mxu0 0.0
          %846 = vmatpush1.msra.mxu0 0.0
          %847 = vmatprep.subr.mxu0 0.0
          %848 = vmatpush1.msra.mxu0 0.0
          %849 = vmatprep.subr.mxu0 0.0
          %850 = vmatpush1.msra.mxu0 0.0
          %851 = vmatprep.subr.mxu0 0.0
          %852 = vmatpush1.msra.mxu0 0.0
          %853 = vmatprep.subr.mxu0 0.0
          %854 = vmatpush1.msra.mxu0 0.0
          %855 = vmatprep.subr.mxu0 0.0
          %856 = vmatpush1.msra.mxu0 0.0
          %857 = vmatprep.subr.mxu0 0.0
          %858 = vmatpush1.msra.mxu0 0.0
          %859 = vmatprep.subr.mxu0 0.0
          %860 = vmatpush1.msra.mxu0 0.0
          %861 = vmatprep.subr.mxu0 0.0
          %862 = vmatpush1.msra.mxu0 0.0
          %863 = vmatprep.subr.mxu0 0.0
          %864 = vmatpush1.msra.mxu0 0.0
          %865 = vmatprep.subr.mxu0 0.0
          %866 = vmatpush1.msra.mxu0 0.0
          %867 = vmatprep.subr.mxu0 0.0
          %868 = vmatpush1.msra.mxu0 0.0
          %869 = vmatprep.subr.mxu0 0.0
          %870 = vmatpush1.msra.mxu0 0.0
          %871 = vmatprep.subr.mxu0 0.0
          %872 = vmatpush1.msra.mxu0 0.0
          %873 = vmatprep.subr.mxu0 0.0
          %874 = vmatpush1.msra.mxu0 0.0
          %875 = vmatprep.mubr.f32.mxu0 0.0
          %v876 = vand.u32 %v260, 4294901760
          %877 = vmatmul.mubr.f32.gmra.mrb[0].mxu0 %v876
          %v878 = vpop.f32.mrb[0].mxu0
          %v879 = vadd.f32 %v796, %v878
          %v880 = vpop.f32.mrb[0].mxu0
          %881 = vmatprep.mubr.f32.mxu0 0.0
          %v882 = vand.u32 %v261, 4294901760
          %883 = vmatmul.mubr.f32.gmra.mrb[0].mxu0 %v882
          %v884 = vpop.f32.mrb[0].mxu0
          %v885 = vadd.f32 %v802, %v884
          %v886 = vpop.f32.mrb[0].mxu0
          %887 = vmatprep.mubr.f32.mxu0 0.0
          %v888 = vand.u32 %v262, 4294901760
          %889 = vmatmul.mubr.f32.gmra.mrb[0].mxu0 %v888
          %v890 = vpop.f32.mrb[0].mxu0
          %v891 = vadd.f32 %v808, %v890
          %v892 = vpop.f32.mrb[0].mxu0
          %893 = vdwg.mxu0
          %894 = vst [vmem:[%s169] sm:$0xff] %v879
          %895 = vst [vmem:[%s169 + $0x8] sm:$0xff] %v885
          %896 = vst [vmem:[%s169 + $0x10] sm:$0xff] %v891
        $region36: #{tpu_custom_call.1} parent=23 // pred_fallthru
          _
        %s897 = sand.u32 %s80, 1
        %s898 = scalar_lea.sflag [#allocation6], %s897
        %s899 = sand.u32 %s80, 1
        %s900 = smul.addr %s899, 24
        %s901 = scalar_lea.vmem [#allocation7], %s900
        // Predicated region
        $region37: #{tpu_custom_call.1} parent=23 // pred_check
          %p902 = pneg %p90
        $region38: #{tpu_custom_call.1} parent=23 // pred_check_branch
          %904 = sbr.rel (%p902) target = $region40
        $region39: #{tpu_custom_call.1} parent=23 // pred_region
          %s905 = smul.u32 3, %s24
          %s907 = ssub.s32 384, 384
          %908 = vsyncadd %s898, %s907
          %s909 = smul.addr %s905, 2
          %s910 = sadd.s32 %s25, %s909
          %s911 = smul.addr %s910, 128
          %s912 = scalar_lea.hbm %s2, %s911
          %s913 = sshll.u32 %s901, 4
          %s914 = int_to_ptr.vmem [resolvable:$true] %s913
          %919 = dma.vmem_to_hbm [thread:$0]  %s914, 384, %s912, %s898, 128, 256, 8
        $region40: #{tpu_custom_call.1} parent=23 // pred_fallthru
          _
      $region24: #{tpu_custom_call.1} parent=5 // pred_fallthru
        _
      %p920 = scmp.le.s32.totalorder 2, %s15
      // Predicated region
      $region41: #{tpu_custom_call.1} parent=5 // pred_check
        %p921 = pneg %p920
      $region42: #{tpu_custom_call.1} parent=5 // pred_check_branch
        %923 = sbr.rel (%p921) target = $region44
      $region43: #{tpu_custom_call.1} parent=5 // pred_region
        %s924 = ssub.s32 %s15, 2
        // Predicated region
        $region45: #{tpu_custom_call.1} parent=43 // pred_check
          %p925 = pneg %p96
        $region46: #{tpu_custom_call.1} parent=43 // pred_check_branch
          %927 = sbr.rel (%p925) target = $region48
        $region47: #{tpu_custom_call.1} parent=43 // pred_region
          %s928 = sand.u32 %s81, 1
          %s929 = scalar_lea.sflag [#allocation6], %s928
          %s930 = sand.u32 %s81, 1
          %s931 = smul.addr %s930, 24
          %s932 = scalar_lea.vmem [#allocation7], %s931
          %933 = dma.done %s929, 384
        $region48: #{tpu_custom_call.1} parent=43 // pred_fallthru
          _
      $region44: #{tpu_custom_call.1} parent=5 // pred_fallthru
        _
    $region6: #{tpu_custom_call.1} parent=1 // loop_footer
      %s19 = sadd.s32 1, %s15
    $region7: #{tpu_custom_call.1} parent=1 // loop_footer_branch
      %14 = sbr.rel target = $region3
    $region8: #{tpu_custom_call.1} parent=1 // loop_exit
      _
    %934 = vsyncpa [#allocation5], 1
    %s935 = scalar_lea.sflag [#allocation5], 1
    %936 = vsyncpa %s935, 1
    %937 = vsyncpa [#allocation6], 1
    %s938 = scalar_lea.sflag [#allocation6], 1
    %939 = vsyncpa %s938, 1

</llo_original>
